<compile_context>
chip_gen: v7x
topology: tpu7x:2x2x1
jax: 0.10.0
libtpu: 0.0.40
codegen_flags: <defaults>
</compile_context>

<pallas_src>
import functools

import jax
import jax.numpy as jnp
from jax import lax
from jax.experimental import pallas as pl
from jax.experimental.pallas import tpu as pltpu

LANE = 128
MAX_ROWS_PER_STEP = 512      # (rows x 128 lanes) streamed per grid step
EPS = 1e-6


def _eastv2_partials_kernel(gs_ref, ps_ref, mk_ref, gg_ref, pg_ref,
                            out_ref, acc_inter, acc_union, acc_smooth,
                            *, t_rows, row_tile, ragged):
    """Accumulates, for one image group, the three global partial sums:

      acc_inter  : gt_score * pred_score * mask
      acc_union  : gt_score * mask + pred_score * mask
      acc_smooth : sum_c smooth_l1_c * gt_geo[8] * gt_score^2 / 8

    All accumulators are (nb, row_tile, 128) f32 VMEM buffers updated purely
    elementwise on the VPU; the three cross-lane reductions run once on the
    last row tile and land in a tiny SMEM output block.
    """
    t = pl.program_id(1)

    @pl.when(t == 0)
    def _():
        acc_inter[...] = jnp.zeros_like(acc_inter)
        acc_union[...] = jnp.zeros_like(acc_union)
        acc_smooth[...] = jnp.zeros_like(acc_smooth)

    f32 = jnp.float32
    gs = gs_ref[...].astype(f32)          # (nb, row_tile, 128) gt_score tile
    ps = ps_ref[...].astype(f32)          # pred_score tile
    mk = mk_ref[...].astype(f32)          # training_mask tile

    # ---- dice partial sums (reuse gs*mk, union merged into one stream) ----
    gsm = gs * mk
    inter_c = gsm * ps
    union_c = gsm + ps * mk

    # ---- smooth-L1 geo partial sum ----
    # sum_c in_loss_c, then scale once by gg[8] * gs^2 / 8 (hoisted).
    in_sum = jnp.zeros_like(gs)
    for c in range(8):                    # static unroll over the 8 channels
        ad = jnp.abs(gg_ref[:, c].astype(f32) - pg_ref[:, c].astype(f32))
        in_sum = in_sum + jnp.where(ad <= gs, ad * ad, ad - 0.5)
    smooth_c = in_sum * (gg_ref[:, 8].astype(f32) * gs * gs * 0.125)

    if ragged:
        # Last row tile reads past the real row extent; mask the garbage rows.
        rows = lax.broadcasted_iota(jnp.int32, gs.shape, 1)
        valid = (t * row_tile + rows) < t_rows
        zero = jnp.zeros_like(gs)
        inter_c = jnp.where(valid, inter_c, zero)
        union_c = jnp.where(valid, union_c, zero)
        smooth_c = jnp.where(valid, smooth_c, zero)

    acc_inter[...] += inter_c
    acc_union[...] += union_c
    acc_smooth[...] += smooth_c

    @pl.when(t == pl.num_programs(1) - 1)
    def _():
        out_ref[0, 0] = jnp.sum(acc_inter[...])
        out_ref[0, 1] = jnp.sum(acc_union[...])
        out_ref[0, 2] = jnp.sum(acc_smooth[...])


def _largest_divisor_leq(n, cap):
    cap = max(1, min(n, cap))
    for d in range(cap, 0, -1):
        if n % d == 0:
            return d
    return 1


def eastv2_loss(gt_score, pred_score, gt_geo, pred_geo, training_mask,
                weight=0.01):
    """gt_score/pred_score/training_mask: (N,1,H,W); gt_geo: (N,9,H,W);
    pred_geo: (N,8,H,W).  Returns scalar loss (float32)."""
    n, _, h, w = gt_score.shape
    hw = h * w
    n_elems = float(n * hw)                       # denominator of torch.mean

    t_rows = pl.cdiv(hw, LANE)                    # 128-lane rows per image
    pad_hw = t_rows * LANE - hw                   # only != 0 if hw % 128 != 0

    def score_slab(x):                            # (N,1,H,W) -> (N,T,128)
        x = x.reshape(n, hw)
        if pad_hw:
            x = jnp.pad(x, ((0, 0), (0, pad_hw)))
        return x.reshape(n, t_rows, LANE)

    def geo_slab(g, n_ch):                        # (N,C,H,W) -> (N,C,T,128)
        g = g.reshape(n, n_ch, hw)
        if pad_hw:
            g = jnp.pad(g, ((0, 0), (0, 0), (0, pad_hw)))
        return g.reshape(n, n_ch, t_rows, LANE)

    gs2 = score_slab(gt_score)
    ps2 = score_slab(pred_score)
    mk2 = score_slab(training_mask)
    gg3 = geo_slab(gt_geo, 9)
    pg3 = geo_slab(pred_geo, 8)

    # --- tiling: big images stream 512-row tiles, small images batch nb ---
    if t_rows >= MAX_ROWS_PER_STEP:
        nb = 1
        row_tile = MAX_ROWS_PER_STEP
    else:
        row_tile = t_rows                         # full extent: always legal
        nb = _largest_divisor_leq(n, MAX_ROWS_PER_STEP // max(row_tile, 1))
    num_row_tiles = pl.cdiv(t_rows, row_tile)
    ragged = (t_rows % row_tile) != 0
    groups = n // nb
    grid = (groups, num_row_tiles)

    def score_map(g, t):
        return (g, t, 0)

    def geo_map(g, t):
        return (g, 0, t, 0)

    kernel = functools.partial(_eastv2_partials_kernel,
                               t_rows=t_rows, row_tile=row_tile, ragged=ragged)

    # VMEM budget: 20 double-buffered input tiles + 3 f32 accumulators.
    tile_elems = nb * row_tile * LANE
    step_bytes = tile_elems * (gs2.dtype.itemsize + ps2.dtype.itemsize
                               + mk2.dtype.itemsize
                               + 9 * gg3.dtype.itemsize
                               + 8 * pg3.dtype.itemsize)
    acc_bytes = 3 * tile_elems * 4
    vmem_limit = int(min(max(2 * step_bytes + acc_bytes + (4 << 20), 16 << 20),
                         48 << 20))

    partials = pl.pallas_call(
        kernel,
        out_shape=jax.ShapeDtypeStruct((groups, 3), jnp.float32),
        grid_spec=pltpu.PrefetchScalarGridSpec(
            num_scalar_prefetch=0,
            grid=grid,
            in_specs=[
                pl.BlockSpec((nb, row_tile, LANE), score_map),
                pl.BlockSpec((nb, row_tile, LANE), score_map),
                pl.BlockSpec((nb, row_tile, LANE), score_map),
                pl.BlockSpec((nb, 9, row_tile, LANE), geo_map),
                pl.BlockSpec((nb, 8, row_tile, LANE), geo_map),
            ],
            out_specs=pl.BlockSpec((1, 3), lambda g, t: (g, 0),
                                   memory_space=pltpu.SMEM),
            scratch_shapes=[pltpu.VMEM((nb, row_tile, LANE), jnp.float32)] * 3,
        ),
        compiler_params=pltpu.CompilerParams(
            dimension_semantics=("parallel", "arbitrary"),
            vmem_limit_bytes=vmem_limit),
    )(gs2, ps2, mk2, gg3, pg3)

    # --- final scalar math in plain JAX (per-group partials combined here) ---
    inter = jnp.sum(partials[:, 0])
    union = jnp.sum(partials[:, 1]) + EPS
    dice_loss = 1.0 - 2.0 * inter / union
    smooth_l1_loss = jnp.sum(partials[:, 2]) / n_elems
    return dice_loss * weight + smooth_l1_loss


def eastv2_loss_ref(gt_score, pred_score, gt_geo, pred_geo, training_mask,
                    weight=0.01):
    """Pure-JAX reference mirroring the PyTorch module."""
    inter = jnp.sum(gt_score * pred_score * training_mask)
    union = (jnp.sum(gt_score * training_mask)
             + jnp.sum(pred_score * training_mask) + 1e-6)
    dice_loss = 1.0 - 2.0 * inter / union

    smooth = jnp.zeros_like(gt_score)
    gg_last = gt_geo[:, 8:9]
    for i in range(8):
        diff = gt_geo[:, i:i + 1] - pred_geo[:, i:i + 1]
        ad = jnp.abs(diff)
        sign = (ad <= gt_score).astype(jnp.float32)
        in_loss = ad * ad * sign + (ad - 0.5) * (1.0 - sign)
        smooth = smooth + gg_last / 8.0 * in_loss * gt_score
    smooth_l1_loss = jnp.mean(smooth * gt_score)
    return dice_loss * weight + smooth_l1_loss


if __name__ == "__main__":
    key = jax.random.PRNGKey(0)
    k1, k2, k3, k4, k5 = jax.random.split(key, 5)

    N, H, W = 2, 16, 16
    gt_score = jax.random.uniform(k1, (N, 1, H, W), jnp.float32)
    pred_score = jax.random.uniform(k2, (N, 1, H, W), jnp.float32)
    training_mask = (jax.random.uniform(k3, (N, 1, H, W)) > 0.3).astype(jnp.float32)
    gt_geo = jax.random.normal(k4, (N, 9, H, W), jnp.float32)
    pred_geo = jax.random.normal(k5, (N, 8, H, W), jnp.float32)

    loss = eastv2_loss(gt_score, pred_score, gt_geo, pred_geo, training_mask,
                       weight=0.01)
    loss = jax.block_until_ready(loss)

    ref = eastv2_loss_ref(gt_score, pred_score, gt_geo, pred_geo,
                          training_mask, weight=0.01)
    assert jnp.allclose(loss, ref, rtol=1e-5, atol=1e-5), (loss, ref)

    print("KERNEL_OK")
</pallas_src>

<mosaic_0001>
module attributes {stable_mosaic.version = 11 : i64} {
  func.func @_eastv2_partials_kernel(%arg0: i32, %arg1: i32, %arg2: memref<2x2x128xf32, #tpu.memory_space<vmem>>, %arg3: memref<2x2x128xf32, #tpu.memory_space<vmem>>, %arg4: memref<2x2x128xf32, #tpu.memory_space<vmem>>, %arg5: memref<2x9x2x128xf32, #tpu.memory_space<vmem>>, %arg6: memref<2x8x2x128xf32, #tpu.memory_space<vmem>>, %arg7: memref<1x3xf32, #tpu.memory_space<smem>>, %arg8: memref<2x2x128xf32, #tpu.memory_space<vmem>>, %arg9: memref<2x2x128xf32, #tpu.memory_space<vmem>>, %arg10: memref<2x2x128xf32, #tpu.memory_space<vmem>>) attributes {dimension_semantics = [#tpu.dimension_semantics<parallel>, #tpu.dimension_semantics<arbitrary>], iteration_bounds = array<i64: 1, 1>, scalar_prefetch = 0 : i64, scratch_operands = 3 : i64, tpu.core_type = #tpu.core_type<tc>, window_params = [{transform_indices = @transform_0, window_bounds = array<i64: 2, 2, 128>}, {transform_indices = @transform_1, window_bounds = array<i64: 2, 2, 128>}, {transform_indices = @transform_2, window_bounds = array<i64: 2, 2, 128>}, {transform_indices = @transform_3, window_bounds = array<i64: 2, 9, 2, 128>}, {transform_indices = @transform_4, window_bounds = array<i64: 2, 8, 2, 128>}, {transform_indices = @transform_5, window_bounds = array<i64: 1, 3>}]} {
    %c0_i32 = arith.constant 0 : i32
    %0 = arith.cmpi eq, %arg1, %c0_i32 : i32
    %1 = arith.extui %0 : i1 to i32
    %c0_i32_0 = arith.constant 0 : i32
    %2 = arith.cmpi ne, %1, %c0_i32_0 : i32
    scf.if %2 {
      %cst_98 = arith.constant 0.000000e+00 : f32
      %126 = vector.broadcast %cst_98 : f32 to vector<2x2x128xf32>
      %c0_99 = arith.constant 0 : index
      %c0_100 = arith.constant 0 : index
      %c0_101 = arith.constant 0 : index
      %127 = vector.load %arg8[%c0_99, %c0_100, %c0_101] : memref<2x2x128xf32, #tpu.memory_space<vmem>>, vector<2x2x128xf32>
      tpu.vector_store %arg8[%c0_99, %c0_100, %c0_101], %126 {strides = array<i32>} : memref<2x2x128xf32, #tpu.memory_space<vmem>>, vector<2x2x128xf32>,
      %cst_102 = arith.constant 0.000000e+00 : f32
      %128 = vector.broadcast %cst_102 : f32 to vector<2x2x128xf32>
      %c0_103 = arith.constant 0 : index
      %c0_104 = arith.constant 0 : index
      %c0_105 = arith.constant 0 : index
      %129 = vector.load %arg9[%c0_103, %c0_104, %c0_105] : memref<2x2x128xf32, #tpu.memory_space<vmem>>, vector<2x2x128xf32>
      tpu.vector_store %arg9[%c0_103, %c0_104, %c0_105], %128 {strides = array<i32>} : memref<2x2x128xf32, #tpu.memory_space<vmem>>, vector<2x2x128xf32>,
      %cst_106 = arith.constant 0.000000e+00 : f32
      %130 = vector.broadcast %cst_106 : f32 to vector<2x2x128xf32>
      %c0_107 = arith.constant 0 : index
      %c0_108 = arith.constant 0 : index
      %c0_109 = arith.constant 0 : index
      %131 = vector.load %arg10[%c0_107, %c0_108, %c0_109] : memref<2x2x128xf32, #tpu.memory_space<vmem>>, vector<2x2x128xf32>
      tpu.vector_store %arg10[%c0_107, %c0_108, %c0_109], %130 {strides = array<i32>} : memref<2x2x128xf32, #tpu.memory_space<vmem>>, vector<2x2x128xf32>,
    } else {
    }
    %c0 = arith.constant 0 : index
    %c0_1 = arith.constant 0 : index
    %c0_2 = arith.constant 0 : index
    %3 = vector.load %arg2[%c0, %c0_1, %c0_2] : memref<2x2x128xf32, #tpu.memory_space<vmem>>, vector<2x2x128xf32>
    %c0_3 = arith.constant 0 : index
    %c0_4 = arith.constant 0 : index
    %c0_5 = arith.constant 0 : index
    %4 = vector.load %arg3[%c0_3, %c0_4, %c0_5] : memref<2x2x128xf32, #tpu.memory_space<vmem>>, vector<2x2x128xf32>
    %c0_6 = arith.constant 0 : index
    %c0_7 = arith.constant 0 : index
    %c0_8 = arith.constant 0 : index
    %5 = vector.load %arg4[%c0_6, %c0_7, %c0_8] : memref<2x2x128xf32, #tpu.memory_space<vmem>>, vector<2x2x128xf32>
    %6 = arith.mulf %3, %5 : vector<2x2x128xf32>
    %7 = arith.mulf %6, %4 : vector<2x2x128xf32>
    %8 = arith.mulf %4, %5 : vector<2x2x128xf32>
    %9 = arith.addf %6, %8 : vector<2x2x128xf32>
    %cst = arith.constant 0.000000e+00 : f32
    %10 = vector.broadcast %cst : f32 to vector<2x2x128xf32>
    %c0_9 = arith.constant 0 : index
    %c0_10 = arith.constant 0 : index
    %c0_11 = arith.constant 0 : index
    %c0_12 = arith.constant 0 : index
    %11 = vector.load %arg5[%c0_9, %c0_10, %c0_11, %c0_12] : memref<2x9x2x128xf32, #tpu.memory_space<vmem>>, vector<2x1x2x128xf32>
    %12 = vector.shape_cast %11 : vector<2x1x2x128xf32> to vector<2x2x128xf32>
    %c0_13 = arith.constant 0 : index
    %c0_14 = arith.constant 0 : index
    %c0_15 = arith.constant 0 : index
    %c0_16 = arith.constant 0 : index
    %13 = vector.load %arg6[%c0_13, %c0_14, %c0_15, %c0_16] : memref<2x8x2x128xf32, #tpu.memory_space<vmem>>, vector<2x1x2x128xf32>
    %14 = vector.shape_cast %13 : vector<2x1x2x128xf32> to vector<2x2x128xf32>
    %15 = arith.subf %12, %14 : vector<2x2x128xf32>
    %16 = math.absf %15 : vector<2x2x128xf32>
    %17 = arith.cmpf ole, %16, %3 : vector<2x2x128xf32>
    %18 = arith.mulf %16, %16 : vector<2x2x128xf32>
    %cst_17 = arith.constant 5.000000e-01 : f32
    %19 = vector.broadcast %cst_17 : f32 to vector<2x2x128xf32>
    %20 = arith.subf %16, %19 : vector<2x2x128xf32>
    %21 = arith.select %17, %18, %20 : vector<2x2x128xi1>, vector<2x2x128xf32>
    %22 = arith.addf %10, %21 : vector<2x2x128xf32>
    %c0_18 = arith.constant 0 : index
    %c1 = arith.constant 1 : index
    %c0_19 = arith.constant 0 : index
    %c0_20 = arith.constant 0 : index
    %23 = vector.load %arg5[%c0_18, %c1, %c0_19, %c0_20] : memref<2x9x2x128xf32, #tpu.memory_space<vmem>>, vector<2x1x2x128xf32>
    %24 = vector.shape_cast %23 : vector<2x1x2x128xf32> to vector<2x2x128xf32>
    %c0_21 = arith.constant 0 : index
    %c1_22 = arith.constant 1 : index
    %c0_23 = arith.constant 0 : index
    %c0_24 = arith.constant 0 : index
    %25 = vector.load %arg6[%c0_21, %c1_22, %c0_23, %c0_24] : memref<2x8x2x128xf32, #tpu.memory_space<vmem>>, vector<2x1x2x128xf32>
    %26 = vector.shape_cast %25 : vector<2x1x2x128xf32> to vector<2x2x128xf32>
    %27 = arith.subf %24, %26 : vector<2x2x128xf32>
    %28 = math.absf %27 : vector<2x2x128xf32>
    %29 = arith.cmpf ole, %28, %3 : vector<2x2x128xf32>
    %30 = arith.mulf %28, %28 : vector<2x2x128xf32>
    %cst_25 = arith.constant 5.000000e-01 : f32
    %31 = vector.broadcast %cst_25 : f32 to vector<2x2x128xf32>
    %32 = arith.subf %28, %31 : vector<2x2x128xf32>
    %33 = arith.select %29, %30, %32 : vector<2x2x128xi1>, vector<2x2x128xf32>
    %34 = arith.addf %22, %33 : vector<2x2x128xf32>
    %c0_26 = arith.constant 0 : index
    %c2 = arith.constant 2 : index
    %c0_27 = arith.constant 0 : index
    %c0_28 = arith.constant 0 : index
    %35 = vector.load %arg5[%c0_26, %c2, %c0_27, %c0_28] : memref<2x9x2x128xf32, #tpu.memory_space<vmem>>, vector<2x1x2x128xf32>
    %36 = vector.shape_cast %35 : vector<2x1x2x128xf32> to vector<2x2x128xf32>
    %c0_29 = arith.constant 0 : index
    %c2_30 = arith.constant 2 : index
    %c0_31 = arith.constant 0 : index
    %c0_32 = arith.constant 0 : index
    %37 = vector.load %arg6[%c0_29, %c2_30, %c0_31, %c0_32] : memref<2x8x2x128xf32, #tpu.memory_space<vmem>>, vector<2x1x2x128xf32>
    %38 = vector.shape_cast %37 : vector<2x1x2x128xf32> to vector<2x2x128xf32>
    %39 = arith.subf %36, %38 : vector<2x2x128xf32>
    %40 = math.absf %39 : vector<2x2x128xf32>
    %41 = arith.cmpf ole, %40, %3 : vector<2x2x128xf32>
    %42 = arith.mulf %40, %40 : vector<2x2x128xf32>
    %cst_33 = arith.constant 5.000000e-01 : f32
    %43 = vector.broadcast %cst_33 : f32 to vector<2x2x128xf32>
    %44 = arith.subf %40, %43 : vector<2x2x128xf32>
    %45 = arith.select %41, %42, %44 : vector<2x2x128xi1>, vector<2x2x128xf32>
    %46 = arith.addf %34, %45 : vector<2x2x128xf32>
    %c0_34 = arith.constant 0 : index
    %c3 = arith.constant 3 : index
    %c0_35 = arith.constant 0 : index
    %c0_36 = arith.constant 0 : index
    %47 = vector.load %arg5[%c0_34, %c3, %c0_35, %c0_36] : memref<2x9x2x128xf32, #tpu.memory_space<vmem>>, vector<2x1x2x128xf32>
    %48 = vector.shape_cast %47 : vector<2x1x2x128xf32> to vector<2x2x128xf32>
    %c0_37 = arith.constant 0 : index
    %c3_38 = arith.constant 3 : index
    %c0_39 = arith.constant 0 : index
    %c0_40 = arith.constant 0 : index
    %49 = vector.load %arg6[%c0_37, %c3_38, %c0_39, %c0_40] : memref<2x8x2x128xf32, #tpu.memory_space<vmem>>, vector<2x1x2x128xf32>
    %50 = vector.shape_cast %49 : vector<2x1x2x128xf32> to vector<2x2x128xf32>
    %51 = arith.subf %48, %50 : vector<2x2x128xf32>
    %52 = math.absf %51 : vector<2x2x128xf32>
    %53 = arith.cmpf ole, %52, %3 : vector<2x2x128xf32>
    %54 = arith.mulf %52, %52 : vector<2x2x128xf32>
    %cst_41 = arith.constant 5.000000e-01 : f32
    %55 = vector.broadcast %cst_41 : f32 to vector<2x2x128xf32>
    %56 = arith.subf %52, %55 : vector<2x2x128xf32>
    %57 = arith.select %53, %54, %56 : vector<2x2x128xi1>, vector<2x2x128xf32>
    %58 = arith.addf %46, %57 : vector<2x2x128xf32>
    %c0_42 = arith.constant 0 : index
    %c4 = arith.constant 4 : index
    %c0_43 = arith.constant 0 : index
    %c0_44 = arith.constant 0 : index
    %59 = vector.load %arg5[%c0_42, %c4, %c0_43, %c0_44] : memref<2x9x2x128xf32, #tpu.memory_space<vmem>>, vector<2x1x2x128xf32>
    %60 = vector.shape_cast %59 : vector<2x1x2x128xf32> to vector<2x2x128xf32>
    %c0_45 = arith.constant 0 : index
    %c4_46 = arith.constant 4 : index
    %c0_47 = arith.constant 0 : index
    %c0_48 = arith.constant 0 : index
    %61 = vector.load %arg6[%c0_45, %c4_46, %c0_47, %c0_48] : memref<2x8x2x128xf32, #tpu.memory_space<vmem>>, vector<2x1x2x128xf32>
    %62 = vector.shape_cast %61 : vector<2x1x2x128xf32> to vector<2x2x128xf32>
    %63 = arith.subf %60, %62 : vector<2x2x128xf32>
    %64 = math.absf %63 : vector<2x2x128xf32>
    %65 = arith.cmpf ole, %64, %3 : vector<2x2x128xf32>
    %66 = arith.mulf %64, %64 : vector<2x2x128xf32>
    %cst_49 = arith.constant 5.000000e-01 : f32
    %67 = vector.broadcast %cst_49 : f32 to vector<2x2x128xf32>
    %68 = arith.subf %64, %67 : vector<2x2x128xf32>
    %69 = arith.select %65, %66, %68 : vector<2x2x128xi1>, vector<2x2x128xf32>
    %70 = arith.addf %58, %69 : vector<2x2x128xf32>
    %c0_50 = arith.constant 0 : index
    %c5 = arith.constant 5 : index
    %c0_51 = arith.constant 0 : index
    %c0_52 = arith.constant 0 : index
    %71 = vector.load %arg5[%c0_50, %c5, %c0_51, %c0_52] : memref<2x9x2x128xf32, #tpu.memory_space<vmem>>, vector<2x1x2x128xf32>
    %72 = vector.shape_cast %71 : vector<2x1x2x128xf32> to vector<2x2x128xf32>
    %c0_53 = arith.constant 0 : index
    %c5_54 = arith.constant 5 : index
    %c0_55 = arith.constant 0 : index
    %c0_56 = arith.constant 0 : index
    %73 = vector.load %arg6[%c0_53, %c5_54, %c0_55, %c0_56] : memref<2x8x2x128xf32, #tpu.memory_space<vmem>>, vector<2x1x2x128xf32>
    %74 = vector.shape_cast %73 : vector<2x1x2x128xf32> to vector<2x2x128xf32>
    %75 = arith.subf %72, %74 : vector<2x2x128xf32>
    %76 = math.absf %75 : vector<2x2x128xf32>
    %77 = arith.cmpf ole, %76, %3 : vector<2x2x128xf32>
    %78 = arith.mulf %76, %76 : vector<2x2x128xf32>
    %cst_57 = arith.constant 5.000000e-01 : f32
    %79 = vector.broadcast %cst_57 : f32 to vector<2x2x128xf32>
    %80 = arith.subf %76, %79 : vector<2x2x128xf32>
    %81 = arith.select %77, %78, %80 : vector<2x2x128xi1>, vector<2x2x128xf32>
    %82 = arith.addf %70, %81 : vector<2x2x128xf32>
    %c0_58 = arith.constant 0 : index
    %c6 = arith.constant 6 : index
    %c0_59 = arith.constant 0 : index
    %c0_60 = arith.constant 0 : index
    %83 = vector.load %arg5[%c0_58, %c6, %c0_59, %c0_60] : memref<2x9x2x128xf32, #tpu.memory_space<vmem>>, vector<2x1x2x128xf32>
    %84 = vector.shape_cast %83 : vector<2x1x2x128xf32> to vector<2x2x128xf32>
    %c0_61 = arith.constant 0 : index
    %c6_62 = arith.constant 6 : index
    %c0_63 = arith.constant 0 : index
    %c0_64 = arith.constant 0 : index
    %85 = vector.load %arg6[%c0_61, %c6_62, %c0_63, %c0_64] : memref<2x8x2x128xf32, #tpu.memory_space<vmem>>, vector<2x1x2x128xf32>
    %86 = vector.shape_cast %85 : vector<2x1x2x128xf32> to vector<2x2x128xf32>
    %87 = arith.subf %84, %86 : vector<2x2x128xf32>
    %88 = math.absf %87 : vector<2x2x128xf32>
    %89 = arith.cmpf ole, %88, %3 : vector<2x2x128xf32>
    %90 = arith.mulf %88, %88 : vector<2x2x128xf32>
    %cst_65 = arith.constant 5.000000e-01 : f32
    %91 = vector.broadcast %cst_65 : f32 to vector<2x2x128xf32>
    %92 = arith.subf %88, %91 : vector<2x2x128xf32>
    %93 = arith.select %89, %90, %92 : vector<2x2x128xi1>, vector<2x2x128xf32>
    %94 = arith.addf %82, %93 : vector<2x2x128xf32>
    %c0_66 = arith.constant 0 : index
    %c7 = arith.constant 7 : index
    %c0_67 = arith.constant 0 : index
    %c0_68 = arith.constant 0 : index
    %95 = vector.load %arg5[%c0_66, %c7, %c0_67, %c0_68] : memref<2x9x2x128xf32, #tpu.memory_space<vmem>>, vector<2x1x2x128xf32>
    %96 = vector.shape_cast %95 : vector<2x1x2x128xf32> to vector<2x2x128xf32>
    %c0_69 = arith.constant 0 : index
    %c7_70 = arith.constant 7 : index
    %c0_71 = arith.constant 0 : index
    %c0_72 = arith.constant 0 : index
    %97 = vector.load %arg6[%c0_69, %c7_70, %c0_71, %c0_72] : memref<2x8x2x128xf32, #tpu.memory_space<vmem>>, vector<2x1x2x128xf32>
    %98 = vector.shape_cast %97 : vector<2x1x2x128xf32> to vector<2x2x128xf32>
    %99 = arith.subf %96, %98 : vector<2x2x128xf32>
    %100 = math.absf %99 : vector<2x2x128xf32>
    %101 = arith.cmpf ole, %100, %3 : vector<2x2x128xf32>
    %102 = arith.mulf %100, %100 : vector<2x2x128xf32>
    %cst_73 = arith.constant 5.000000e-01 : f32
    %103 = vector.broadcast %cst_73 : f32 to vector<2x2x128xf32>
    %104 = arith.subf %100, %103 : vector<2x2x128xf32>
    %105 = arith.select %101, %102, %104 : vector<2x2x128xi1>, vector<2x2x128xf32>
    %106 = arith.addf %94, %105 : vector<2x2x128xf32>
    %c0_74 = arith.constant 0 : index
    %c8 = arith.constant 8 : index
    %c0_75 = arith.constant 0 : index
    %c0_76 = arith.constant 0 : index
    %107 = vector.load %arg5[%c0_74, %c8, %c0_75, %c0_76] : memref<2x9x2x128xf32, #tpu.memory_space<vmem>>, vector<2x1x2x128xf32>
    %108 = vector.shape_cast %107 : vector<2x1x2x128xf32> to vector<2x2x128xf32>
    %109 = arith.mulf %108, %3 : vector<2x2x128xf32>
    %110 = arith.mulf %109, %3 : vector<2x2x128xf32>
    %cst_77 = arith.constant 1.250000e-01 : f32
    %111 = vector.broadcast %cst_77 : f32 to vector<2x2x128xf32>
    %112 = arith.mulf %110, %111 : vector<2x2x128xf32>
    %113 = arith.mulf %106, %112 : vector<2x2x128xf32>
    %c0_78 = arith.constant 0 : index
    %c0_79 = arith.constant 0 : index
    %c0_80 = arith.constant 0 : index
    %114 = vector.load %arg8[%c0_78, %c0_79, %c0_80] : memref<2x2x128xf32, #tpu.memory_space<vmem>>, vector<2x2x128xf32>
    %115 = arith.addf %114, %7 : vector<2x2x128xf32>
    %c0_81 = arith.constant 0 : index
    %c0_82 = arith.constant 0 : index
    %c0_83 = arith.constant 0 : index
    %116 = vector.load %arg8[%c0_81, %c0_82, %c0_83] : memref<2x2x128xf32, #tpu.memory_space<vmem>>, vector<2x2x128xf32>
    tpu.vector_store %arg8[%c0_81, %c0_82, %c0_83], %115 {strides = array<i32>} : memref<2x2x128xf32, #tpu.memory_space<vmem>>, vector<2x2x128xf32>,
    %c0_84 = arith.constant 0 : index
    %c0_85 = arith.constant 0 : index
    %c0_86 = arith.constant 0 : index
    %117 = vector.load %arg9[%c0_84, %c0_85, %c0_86] : memref<2x2x128xf32, #tpu.memory_space<vmem>>, vector<2x2x128xf32>
    %118 = arith.addf %117, %9 : vector<2x2x128xf32>
    %c0_87 = arith.constant 0 : index
    %c0_88 = arith.constant 0 : index
    %c0_89 = arith.constant 0 : index
    %119 = vector.load %arg9[%c0_87, %c0_88, %c0_89] : memref<2x2x128xf32, #tpu.memory_space<vmem>>, vector<2x2x128xf32>
    tpu.vector_store %arg9[%c0_87, %c0_88, %c0_89], %118 {strides = array<i32>} : memref<2x2x128xf32, #tpu.memory_space<vmem>>, vector<2x2x128xf32>,
    %c0_90 = arith.constant 0 : index
    %c0_91 = arith.constant 0 : index
    %c0_92 = arith.constant 0 : index
    %120 = vector.load %arg10[%c0_90, %c0_91, %c0_92] : memref<2x2x128xf32, #tpu.memory_space<vmem>>, vector<2x2x128xf32>
    %121 = arith.addf %120, %113 : vector<2x2x128xf32>
    %c0_93 = arith.constant 0 : index
    %c0_94 = arith.constant 0 : index
    %c0_95 = arith.constant 0 : index
    %122 = vector.load %arg10[%c0_93, %c0_94, %c0_95] : memref<2x2x128xf32, #tpu.memory_space<vmem>>, vector<2x2x128xf32>
    tpu.vector_store %arg10[%c0_93, %c0_94, %c0_95], %121 {strides = array<i32>} : memref<2x2x128xf32, #tpu.memory_space<vmem>>, vector<2x2x128xf32>,
    %c0_i32_96 = arith.constant 0 : i32
    %123 = arith.cmpi eq, %arg1, %c0_i32_96 : i32
    %124 = arith.extui %123 : i1 to i32
    %c0_i32_97 = arith.constant 0 : i32
    %125 = arith.cmpi ne, %124, %c0_i32_97 : i32
    scf.if %125 {
      %c0_98 = arith.constant 0 : index
      %c0_99 = arith.constant 0 : index
      %c0_100 = arith.constant 0 : index
      %126 = vector.load %arg8[%c0_98, %c0_99, %c0_100] : memref<2x2x128xf32, #tpu.memory_space<vmem>>, vector<2x2x128xf32>
      %127 = vector.shape_cast %126 : vector<2x2x128xf32> to vector<1x2x2x128xf32>
      %cst_101 = arith.constant dense<0.000000e+00> : vector<1xf32>
      %128 = vector.multi_reduction <add>, %127, %cst_101 [1, 2, 3] : vector<1x2x2x128xf32> to vector<1xf32>
      %129 = vector.shape_cast %128 : vector<1xf32> to vector<1x1x1x1xf32>
      %130 = vector.extract %129[0, 0, 0, 0] : f32 from vector<1x1x1x1xf32>
      %c0_102 = arith.constant 0 : index
      %c0_103 = arith.constant 0 : index
      %131 = memref.load %arg7[%c0_102, %c0_103] : memref<1x3xf32, #tpu.memory_space<smem>>
      memref.store %130, %arg7[%c0_102, %c0_103] : memref<1x3xf32, #tpu.memory_space<smem>>
      %c0_104 = arith.constant 0 : index
      %c0_105 = arith.constant 0 : index
      %c0_106 = arith.constant 0 : index
      %132 = vector.load %arg9[%c0_104, %c0_105, %c0_106] : memref<2x2x128xf32, #tpu.memory_space<vmem>>, vector<2x2x128xf32>
      %133 = vector.shape_cast %132 : vector<2x2x128xf32> to vector<1x2x2x128xf32>
      %cst_107 = arith.constant dense<0.000000e+00> : vector<1xf32>
      %134 = vector.multi_reduction <add>, %133, %cst_107 [1, 2, 3] : vector<1x2x2x128xf32> to vector<1xf32>
      %135 = vector.shape_cast %134 : vector<1xf32> to vector<1x1x1x1xf32>
      %136 = vector.extract %135[0, 0, 0, 0] : f32 from vector<1x1x1x1xf32>
      %c0_108 = arith.constant 0 : index
      %c1_109 = arith.constant 1 : index
      %137 = memref.load %arg7[%c0_108, %c1_109] : memref<1x3xf32, #tpu.memory_space<smem>>
      memref.store %136, %arg7[%c0_108, %c1_109] : memref<1x3xf32, #tpu.memory_space<smem>>
      %c0_110 = arith.constant 0 : index
      %c0_111 = arith.constant 0 : index
      %c0_112 = arith.constant 0 : index
      %138 = vector.load %arg10[%c0_110, %c0_111, %c0_112] : memref<2x2x128xf32, #tpu.memory_space<vmem>>, vector<2x2x128xf32>
      %139 = vector.shape_cast %138 : vector<2x2x128xf32> to vector<1x2x2x128xf32>
      %cst_113 = arith.constant dense<0.000000e+00> : vector<1xf32>
      %140 = vector.multi_reduction <add>, %139, %cst_113 [1, 2, 3] : vector<1x2x2x128xf32> to vector<1xf32>
      %141 = vector.shape_cast %140 : vector<1xf32> to vector<1x1x1x1xf32>
      %142 = vector.extract %141[0, 0, 0, 0] : f32 from vector<1x1x1x1xf32>
      %c0_114 = arith.constant 0 : index
      %c2_115 = arith.constant 2 : index
      %143 = memref.load %arg7[%c0_114, %c2_115] : memref<1x3xf32, #tpu.memory_space<smem>>
      memref.store %142, %arg7[%c0_114, %c2_115] : memref<1x3xf32, #tpu.memory_space<smem>>
    } else {
    }
    return
  }
  func.func @transform_0(%arg0: i32, %arg1: i32) -> (i32, i32, i32) {
    %c0_i32 = arith.constant 0 : i32
    %c0_i32_0 = arith.constant 0 : i32
    return %arg0, %arg1, %c0_i32 : i32, i32, i32
  }
  func.func @transform_1(%arg0: i32, %arg1: i32) -> (i32, i32, i32) {
    %c0_i32 = arith.constant 0 : i32
    %c0_i32_0 = arith.constant 0 : i32
    return %arg0, %arg1, %c0_i32 : i32, i32, i32
  }
  func.func @transform_2(%arg0: i32, %arg1: i32) -> (i32, i32, i32) {
    %c0_i32 = arith.constant 0 : i32
    %c0_i32_0 = arith.constant 0 : i32
    return %arg0, %arg1, %c0_i32 : i32, i32, i32
  }
  func.func @transform_3(%arg0: i32, %arg1: i32) -> (i32, i32, i32, i32) {
    %c0_i32 = arith.constant 0 : i32
    %c0_i32_0 = arith.constant 0 : i32
    %c0_i32_1 = arith.constant 0 : i32
    return %arg0, %c0_i32, %arg1, %c0_i32_0 : i32, i32, i32, i32
  }
  func.func @transform_4(%arg0: i32, %arg1: i32) -> (i32, i32, i32, i32) {
    %c0_i32 = arith.constant 0 : i32
    %c0_i32_0 = arith.constant 0 : i32
    %c0_i32_1 = arith.constant 0 : i32
    return %arg0, %c0_i32, %arg1, %c0_i32_0 : i32, i32, i32, i32
  }
  func.func @transform_5(%arg0: i32, %arg1: i32) -> (i32, i32) {
    %c0_i32 = arith.constant 0 : i32
    %c0_i32_0 = arith.constant 0 : i32
    return %arg0, %c0_i32 : i32, i32
  }
}

</mosaic_0001>

<llo_original>
// kernel: tpu_custom_call.1
$region0: #{tpu_custom_call.1}
  #allocation0 [shape = 'u32[]', space=smem, size = 0x4, offset = 0x4, fixed_abs, tag = 'smem constant byte address 0x4 - core index']
  #allocation1 [shape = 'u32[144,128]{1,0:T(1,128)}', space=vmem, size = 0x12000, scoped, tag = 'internal scratch']
  #allocation2 [shape = 'f32[2,2,128]{2,1,0:T(2,128)}', space=vmem, size = 0x800, scoped, tag = 'scratch operand']
  #allocation3 [shape = 'f32[2,2,128]{2,1,0:T(2,128)}', space=vmem, size = 0x800, scoped, tag = 'scratch operand']
  #allocation4 [shape = 'f32[2,2,128]{2,1,0:T(2,128)}', space=vmem, size = 0x800, scoped, tag = 'scratch operand']
  %s0 = inlined_call_operand.hbm [shape: f32[2,2,128], index: 0, kind: input, shape index: {}]
  %s1 = inlined_call_operand.hbm [shape: f32[2,2,128], index: 1, kind: input, shape index: {}]
  %s2 = inlined_call_operand.vmem [shape: f32[2,2,128], index: 2, kind: input, shape index: {}]
  %s3 = inlined_call_operand.hbm [shape: f32[2,9,2,128], index: 3, kind: input, shape index: {}]
  %s4 = inlined_call_operand.hbm [shape: f32[2,8,2,128], index: 4, kind: input, shape index: {}]
  %s5 = inlined_call_operand.hbm [shape: f32[1,3], index: 5, kind: output, shape index: {}]
  %s6 = sld [smem:[#allocation0]]
  $region54: #{tpu_custom_call.1} parent=0
    _
  %s8 = ssub.s32 1, %s6
  %s9 = scalar_select 0, %s8, %s6
  $region1: #{tpu_custom_call.1} parent=0
    #allocation5 [shape = 'u8[2048]{0}', space=vmem, size = 0x800, scoped, tag = 'input window, operand 0, single buffered']
    #allocation6 [shape = 's32[1]{0}', space=sflag, size = 0x4, scoped, tag = 'scoped memory for tpu_custom_call.1']
    #allocation7 [shape = 's32[1]{0}', space=sflag, size = 0x4, scoped, tag = 'scoped memory for tpu_custom_call.1']
    #allocation8 [shape = 'u8[2048]{0}', space=vmem, size = 0x800, scoped, tag = 'input window, operand 1, single buffered']
    #allocation9 [shape = 's32[1]{0}', space=sflag, size = 0x4, scoped, tag = 'scoped memory for tpu_custom_call.1']
    #allocation10 [shape = 'u8[18432]{0}', space=vmem, size = 0x4800, scoped, tag = 'input window, operand 3, single buffered']
    #allocation11 [shape = 'u8[16384]{0}', space=vmem, size = 0x4000, scoped, tag = 'input window, operand 4, single buffered']
    #allocation12 [shape = 's32[1]{0}', space=sflag, size = 0x4, scoped, tag = 'scoped memory for tpu_custom_call.1']
    #allocation13 [shape = 'u8[512]{0}', space=smem, size = 0x200, scoped, tag = 'output window, operand 0, single buffered']
    %10 = vsyncpa [#allocation6], 0
    %11 = vsyncpa [#allocation9], 0
    %12 = vsyncpa [#allocation12], 0
    %13 = vsyncpa [#allocation7], 0
    // Predicated region
    $region2: #{tpu_custom_call.1} parent=1 // pred_check
      _
    $region3: #{tpu_custom_call.1} parent=1 // pred_check_branch
      %15 = sbr.rel (0) target = $region5
    $region4: #{tpu_custom_call.1} parent=1 // pred_region
      %s17 = ssub.s32 64, 64
      %18 = vsyncadd [#allocation6], %s17
      %s19 = sshll.u32 [#allocation5], 4
      %s20 = int_to_ptr.vmem [resolvable:$true] %s19
      %25 = dma.hbm_to_vmem [thread:$0]  %s0, 64, %s20, [#allocation6], 32, 32, 2
    $region5: #{tpu_custom_call.1} parent=1 // pred_fallthru
      _
    // Predicated region
    $region6: #{tpu_custom_call.1} parent=1 // pred_check
      _
    $region7: #{tpu_custom_call.1} parent=1 // pred_check_branch
      %27 = sbr.rel (0) target = $region9
    $region8: #{tpu_custom_call.1} parent=1 // pred_region
      %s29 = ssub.s32 64, 64
      %30 = vsyncadd [#allocation9], %s29
      %s31 = sshll.u32 [#allocation8], 4
      %s32 = int_to_ptr.vmem [resolvable:$true] %s31
      %37 = dma.hbm_to_vmem [thread:$0]  %s1, 64, %s32, [#allocation9], 32, 32, 2
    $region9: #{tpu_custom_call.1} parent=1 // pred_fallthru
      _
    // Predicated region
    $region10: #{tpu_custom_call.1} parent=1 // pred_check
      _
    $region11: #{tpu_custom_call.1} parent=1 // pred_check_branch
      %39 = sbr.rel (0) target = $region13
    $region12: #{tpu_custom_call.1} parent=1 // pred_region
      _
    $region13: #{tpu_custom_call.1} parent=1 // pred_fallthru
      _
    // Predicated region
    $region14: #{tpu_custom_call.1} parent=1 // pred_check
      _
    $region15: #{tpu_custom_call.1} parent=1 // pred_check_branch
      %41 = sbr.rel (0) target = $region17
    $region16: #{tpu_custom_call.1} parent=1 // pred_region
      %s43 = ssub.s32 576, 576
      %44 = vsyncadd [#allocation9], %s43
      %s45 = sshll.u32 [#allocation10], 4
      %s46 = int_to_ptr.vmem [resolvable:$true] %s45
      %51 = dma.hbm_to_vmem [thread:$0]  %s3, 576, %s46, [#allocation9], 32, 32, 2
    $region17: #{tpu_custom_call.1} parent=1 // pred_fallthru
      _
    // Predicated region
    $region18: #{tpu_custom_call.1} parent=1 // pred_check
      _
    $region19: #{tpu_custom_call.1} parent=1 // pred_check_branch
      %53 = sbr.rel (0) target = $region21
    $region20: #{tpu_custom_call.1} parent=1 // pred_region
      %s55 = ssub.s32 512, 512
      %56 = vsyncadd [#allocation12], %s55
      %s57 = sshll.u32 [#allocation11], 4
      %s58 = int_to_ptr.vmem [resolvable:$true] %s57
      %63 = dma.hbm_to_vmem [thread:$0]  %s4, 512, %s58, [#allocation12], 32, 32, 2
    $region21: #{tpu_custom_call.1} parent=1 // pred_fallthru
      _
    // Predicated region
    $region22: #{tpu_custom_call.1} parent=1 // pred_check
      _
    $region23: #{tpu_custom_call.1} parent=1 // pred_check_branch
      %65 = sbr.rel (0) target = $region25
    $region24: #{tpu_custom_call.1} parent=1 // pred_region
      %66 = dma.done [#allocation6], 64
    $region25: #{tpu_custom_call.1} parent=1 // pred_fallthru
      _
    // Predicated region
    $region26: #{tpu_custom_call.1} parent=1 // pred_check
      _
    $region27: #{tpu_custom_call.1} parent=1 // pred_check_branch
      %68 = sbr.rel (0) target = $region29
    $region28: #{tpu_custom_call.1} parent=1 // pred_region
      %69 = dma.done [#allocation9], 64
    $region29: #{tpu_custom_call.1} parent=1 // pred_fallthru
      _
    // Predicated region
    $region30: #{tpu_custom_call.1} parent=1 // pred_check
      _
    $region31: #{tpu_custom_call.1} parent=1 // pred_check_branch
      %71 = sbr.rel (0) target = $region33
    $region32: #{tpu_custom_call.1} parent=1 // pred_region
      %72 = dma.done [#allocation9], 576
    $region33: #{tpu_custom_call.1} parent=1 // pred_fallthru
      _
    // Predicated region
    $region34: #{tpu_custom_call.1} parent=1 // pred_check
      _
    $region35: #{tpu_custom_call.1} parent=1 // pred_check_branch
      %74 = sbr.rel (0) target = $region37
    $region36: #{tpu_custom_call.1} parent=1 // pred_region
      %75 = dma.done [#allocation12], 512
    $region37: #{tpu_custom_call.1} parent=1 // pred_fallthru
      _
    %p76 = scmp.eq.s32.totalorder 0, 0
    // Predicated region
    $region38: #{tpu_custom_call.1} parent=1 // pred_check
      %p77 = pneg %p76
    $region39: #{tpu_custom_call.1} parent=1 // pred_check_branch
      %79 = sbr.rel (%p77) target = $region41
    $region40: #{tpu_custom_call.1} parent=1 // pred_region
      %80 = vst [vmem:[#allocation2] sm:$0x3] 0.0
      %81 = vst [vmem:[#allocation2 + $0x2] sm:$0x3] 0.0
      %82 = vst [vmem:[#allocation3] sm:$0x3] 0.0
      %83 = vst [vmem:[#allocation3 + $0x2] sm:$0x3] 0.0
      %84 = vst [vmem:[#allocation4] sm:$0x3] 0.0
      %85 = vst [vmem:[#allocation4 + $0x2] sm:$0x3] 0.0
    $region41: #{tpu_custom_call.1} parent=1 // pred_fallthru
      _
    %v86 = vld [vmem:[#allocation5] sm:$0x3]
    %v87 = vld [vmem:[#allocation5 + $0x2] sm:$0x3]
    %v88 = vld [vmem:[#allocation8] sm:$0x3]
    %v89 = vld [vmem:[#allocation8 + $0x2] sm:$0x3]
    %v90 = vld [vmem:[%s2] sm:$0x3]
    %v91 = vld [vmem:[%s2 + $0x2] sm:$0x3]
    %v92 = vmul.f32 %v86, %v90
    %v93 = vmul.f32 %v87, %v91
    %v94 = vmul.f32 %v92, %v88
    %v95 = vmul.f32 %v93, %v89
    %v96 = vmul.f32 %v88, %v90
    %v97 = vmul.f32 %v89, %v91
    %v98 = vadd.f32 %v92, %v96
    %v99 = vadd.f32 %v93, %v97
    %v100 = vld [vmem:[#allocation10] sm:$0x3]
    %v101 = vld [vmem:[#allocation10 + $0x12] sm:$0x3]
    %v102 = vld [vmem:[#allocation11] sm:$0x3]
    %v103 = vld [vmem:[#allocation11 + $0x10] sm:$0x3]
    %v104 = vsub.f32 %v100, %v102
    %v105 = vsub.f32 %v101, %v103
    %v106 = vand.u32 2147483647, %v104
    %v107 = vand.u32 2147483647, %v105
    %vm108 = vcmp.le.f32.partialorder %v106, %v86
    %vm109 = vcmp.le.f32.partialorder %v107, %v87
    %v110 = vmul.f32 %v106, %v106
    %v111 = vmul.f32 %v107, %v107
    %v112 = vsub.f32 %v106, 0.5
    %v113 = vsub.f32 %v107, 0.5
    %v114 = vsel %vm108, %v110, %v112
    %v115 = vsel %vm109, %v111, %v113
    %v116 = vadd.f32 %v114, 0.0
    %v117 = vadd.f32 %v115, 0.0
    %s118 = scalar_lea.vmem [#allocation10], 2
    %v119 = vld [vmem:[%s118] sm:$0x3]
    %v120 = vld [vmem:[%s118 + $0x12] sm:$0x3]
    %s121 = scalar_lea.vmem [#allocation11], 2
    %v122 = vld [vmem:[%s121] sm:$0x3]
    %v123 = vld [vmem:[%s121 + $0x10] sm:$0x3]
    %v124 = vsub.f32 %v119, %v122
    %v125 = vsub.f32 %v120, %v123
    %v126 = vand.u32 2147483647, %v124
    %v127 = vand.u32 2147483647, %v125
    %vm128 = vcmp.le.f32.partialorder %v126, %v86
    %vm129 = vcmp.le.f32.partialorder %v127, %v87
    %v130 = vmul.f32 %v126, %v126
    %v131 = vmul.f32 %v127, %v127
    %v132 = vsub.f32 %v126, 0.5
    %v133 = vsub.f32 %v127, 0.5
    %v134 = vsel %vm128, %v130, %v132
    %v135 = vsel %vm129, %v131, %v133
    %v136 = vadd.f32 %v116, %v134
    %v137 = vadd.f32 %v117, %v135
    %s138 = scalar_lea.vmem [#allocation10], 4
    %v139 = vld [vmem:[%s138] sm:$0x3]
    %v140 = vld [vmem:[%s138 + $0x12] sm:$0x3]
    %s141 = scalar_lea.vmem [#allocation11], 4
    %v142 = vld [vmem:[%s141] sm:$0x3]
    %v143 = vld [vmem:[%s141 + $0x10] sm:$0x3]
    %v144 = vsub.f32 %v139, %v142
    %v145 = vsub.f32 %v140, %v143
    %v146 = vand.u32 2147483647, %v144
    %v147 = vand.u32 2147483647, %v145
    %vm148 = vcmp.le.f32.partialorder %v146, %v86
    %vm149 = vcmp.le.f32.partialorder %v147, %v87
    %v150 = vmul.f32 %v146, %v146
    %v151 = vmul.f32 %v147, %v147
    %v152 = vsub.f32 %v146, 0.5
    %v153 = vsub.f32 %v147, 0.5
    %v154 = vsel %vm148, %v150, %v152
    %v155 = vsel %vm149, %v151, %v153
    %v156 = vadd.f32 %v136, %v154
    %v157 = vadd.f32 %v137, %v155
    %s158 = scalar_lea.vmem [#allocation10], 6
    %v159 = vld [vmem:[%s158] sm:$0x3]
    %v160 = vld [vmem:[%s158 + $0x12] sm:$0x3]
    %s161 = scalar_lea.vmem [#allocation11], 6
    %v162 = vld [vmem:[%s161] sm:$0x3]
    %v163 = vld [vmem:[%s161 + $0x10] sm:$0x3]
    %v164 = vsub.f32 %v159, %v162
    %v165 = vsub.f32 %v160, %v163
    %v166 = vand.u32 2147483647, %v164
    %v167 = vand.u32 2147483647, %v165
    %vm168 = vcmp.le.f32.partialorder %v166, %v86
    %vm169 = vcmp.le.f32.partialorder %v167, %v87
    %v170 = vmul.f32 %v166, %v166
    %v171 = vmul.f32 %v167, %v167
    %v172 = vsub.f32 %v166, 0.5
    %v173 = vsub.f32 %v167, 0.5
    %v174 = vsel %vm168, %v170, %v172
    %v175 = vsel %vm169, %v171, %v173
    %v176 = vadd.f32 %v156, %v174
    %v177 = vadd.f32 %v157, %v175
    %s178 = scalar_lea.vmem [#allocation10], 8
    %v179 = vld [vmem:[%s178] sm:$0x3]
    %v180 = vld [vmem:[%s178 + $0x12] sm:$0x3]
    %s181 = scalar_lea.vmem [#allocation11], 8
    %v182 = vld [vmem:[%s181] sm:$0x3]
    %v183 = vld [vmem:[%s181 + $0x10] sm:$0x3]
    %v184 = vsub.f32 %v179, %v182
    %v185 = vsub.f32 %v180, %v183
    %v186 = vand.u32 2147483647, %v184
    %v187 = vand.u32 2147483647, %v185
    %vm188 = vcmp.le.f32.partialorder %v186, %v86
    %vm189 = vcmp.le.f32.partialorder %v187, %v87
    %v190 = vmul.f32 %v186, %v186
    %v191 = vmul.f32 %v187, %v187
    %v192 = vsub.f32 %v186, 0.5
    %v193 = vsub.f32 %v187, 0.5
    %v194 = vsel %vm188, %v190, %v192
    %v195 = vsel %vm189, %v191, %v193
    %v196 = vadd.f32 %v176, %v194
    %v197 = vadd.f32 %v177, %v195
    %s198 = scalar_lea.vmem [#allocation10], 10
    %v199 = vld [vmem:[%s198] sm:$0x3]
    %v200 = vld [vmem:[%s198 + $0x12] sm:$0x3]
    %s201 = scalar_lea.vmem [#allocation11], 10
    %v202 = vld [vmem:[%s201] sm:$0x3]
    %v203 = vld [vmem:[%s201 + $0x10] sm:$0x3]
    %v204 = vsub.f32 %v199, %v202
    %v205 = vsub.f32 %v200, %v203
    %v206 = vand.u32 2147483647, %v204
    %v207 = vand.u32 2147483647, %v205
    %vm208 = vcmp.le.f32.partialorder %v206, %v86
    %vm209 = vcmp.le.f32.partialorder %v207, %v87
    %v210 = vmul.f32 %v206, %v206
    %v211 = vmul.f32 %v207, %v207
    %v212 = vsub.f32 %v206, 0.5
    %v213 = vsub.f32 %v207, 0.5
    %v214 = vsel %vm208, %v210, %v212
    %v215 = vsel %vm209, %v211, %v213
    %v216 = vadd.f32 %v196, %v214
    %v217 = vadd.f32 %v197, %v215
    %s218 = scalar_lea.vmem [#allocation10], 12
    %v219 = vld [vmem:[%s218] sm:$0x3]
    %v220 = vld [vmem:[%s218 + $0x12] sm:$0x3]
    %s221 = scalar_lea.vmem [#allocation11], 12
    %v222 = vld [vmem:[%s221] sm:$0x3]
    %v223 = vld [vmem:[%s221 + $0x10] sm:$0x3]
    %v224 = vsub.f32 %v219, %v222
    %v225 = vsub.f32 %v220, %v223
    %v226 = vand.u32 2147483647, %v224
    %v227 = vand.u32 2147483647, %v225
    %vm228 = vcmp.le.f32.partialorder %v226, %v86
    %vm229 = vcmp.le.f32.partialorder %v227, %v87
    %v230 = vmul.f32 %v226, %v226
    %v231 = vmul.f32 %v227, %v227
    %v232 = vsub.f32 %v226, 0.5
    %v233 = vsub.f32 %v227, 0.5
    %v234 = vsel %vm228, %v230, %v232
    %v235 = vsel %vm229, %v231, %v233
    %v236 = vadd.f32 %v216, %v234
    %v237 = vadd.f32 %v217, %v235
    %s238 = scalar_lea.vmem [#allocation10], 14
    %v239 = vld [vmem:[%s238] sm:$0x3]
    %v240 = vld [vmem:[%s238 + $0x12] sm:$0x3]
    %s241 = scalar_lea.vmem [#allocation11], 14
    %v242 = vld [vmem:[%s241] sm:$0x3]
    %v243 = vld [vmem:[%s241 + $0x10] sm:$0x3]
    %v244 = vsub.f32 %v239, %v242
    %v245 = vsub.f32 %v240, %v243
    %v246 = vand.u32 2147483647, %v244
    %v247 = vand.u32 2147483647, %v245
    %vm248 = vcmp.le.f32.partialorder %v246, %v86
    %vm249 = vcmp.le.f32.partialorder %v247, %v87
    %v250 = vmul.f32 %v246, %v246
    %v251 = vmul.f32 %v247, %v247
    %v252 = vsub.f32 %v246, 0.5
    %v253 = vsub.f32 %v247, 0.5
    %v254 = vsel %vm248, %v250, %v252
    %v255 = vsel %vm249, %v251, %v253
    %v256 = vadd.f32 %v236, %v254
    %v257 = vadd.f32 %v237, %v255
    %s258 = scalar_lea.vmem [#allocation10], 16
    %v259 = vld [vmem:[%s258] sm:$0x3]
    %v260 = vld [vmem:[%s258 + $0x12] sm:$0x3]
    %v261 = vmul.f32 %v259, %v86
    %v262 = vmul.f32 %v260, %v87
    %v263 = vmul.f32 %v261, %v86
    %v264 = vmul.f32 %v262, %v87
    %v265 = vmul.f32 %v263, 0.125
    %v266 = vmul.f32 %v264, 0.125
    %v267 = vmul.f32 %v256, %v265
    %v268 = vmul.f32 %v257, %v266
    %v269 = vld [vmem:[#allocation2] sm:$0x3]
    %v270 = vld [vmem:[#allocation2 + $0x2] sm:$0x3]
    %v271 = vadd.f32 %v269, %v94
    %v272 = vadd.f32 %v270, %v95
    %273 = vst [vmem:[#allocation2] sm:$0x3] %v271
    %274 = vst [vmem:[#allocation2 + $0x2] sm:$0x3] %v272
    %v275 = vld [vmem:[#allocation3] sm:$0x3]
    %v276 = vld [vmem:[#allocation3 + $0x2] sm:$0x3]
    %v277 = vadd.f32 %v275, %v98
    %v278 = vadd.f32 %v276, %v99
    %279 = vst [vmem:[#allocation3] sm:$0x3] %v277
    %280 = vst [vmem:[#allocation3 + $0x2] sm:$0x3] %v278
    %v281 = vld [vmem:[#allocation4] sm:$0x3]
    %v282 = vld [vmem:[#allocation4 + $0x2] sm:$0x3]
    %v283 = vadd.f32 %v281, %v267
    %v284 = vadd.f32 %v282, %v268
    %285 = vst [vmem:[#allocation4] sm:$0x3] %v283
    %286 = vst [vmem:[#allocation4 + $0x2] sm:$0x3] %v284
    // Predicated region
    $region42: #{tpu_custom_call.1} parent=1 // pred_check
      %p287 = pneg %p76
    $region43: #{tpu_custom_call.1} parent=1 // pred_check_branch
      %289 = sbr.rel (%p287) target = $region45
    $region44: #{tpu_custom_call.1} parent=1 // pred_region
      %v290 = vld [vmem:[#allocation2] sm:$0x3]
      %v291 = vld [vmem:[#allocation2 + $0x2] sm:$0x3]
      %vm292 = vcmask 1041408
      %v293 = vsel %vm292, %v290, 0.0
      %v294 = vsel %vm292, %v291, 0.0
      %v295 = vadd.f32 %v293, %v294
      %296 = vadd.xlane.f32.xlu0 %v295
      %v297 = vpop.xlane.xlu0 %296
      %v298 = vrot.slane %v297, 4
      %v299 = vadd.f32 %v297, %v298
      %v300 = vrot.slane %v299, 2
      %v301 = vadd.f32 %v299, %v300
      %v302 = vrot.slane %v301, 1
      %v303 = vadd.f32 %v301, %v302
      %s304 = vtos %v303
      %s305 = scalar_lea.smem [#allocation13], 0
      %306 = sst [smem:[%s305]] %s304
      %v307 = vld [vmem:[#allocation3] sm:$0x3]
      %v308 = vld [vmem:[#allocation3 + $0x2] sm:$0x3]
      %v309 = vsel %vm292, %v307, 0.0
      %v310 = vsel %vm292, %v308, 0.0
      %v311 = vadd.f32 %v309, %v310
      %312 = vadd.xlane.f32.xlu0 %v311
      %v313 = vpop.xlane.xlu0 %312
      %v314 = vrot.slane %v313, 4
      %v315 = vadd.f32 %v313, %v314
      %v316 = vrot.slane %v315, 2
      %v317 = vadd.f32 %v315, %v316
      %v318 = vrot.slane %v317, 1
      %v319 = vadd.f32 %v317, %v318
      %s320 = vtos %v319
      %s321 = scalar_lea.smem [#allocation13], 1
      %322 = sst [smem:[%s321]] %s320
      %v323 = vld [vmem:[#allocation4] sm:$0x3]
      %v324 = vld [vmem:[#allocation4 + $0x2] sm:$0x3]
      %v325 = vsel %vm292, %v323, 0.0
      %v326 = vsel %vm292, %v324, 0.0
      %v327 = vadd.f32 %v325, %v326
      %328 = vadd.xlane.f32.xlu0 %v327
      %v329 = vpop.xlane.xlu0 %328
      %v330 = vrot.slane %v329, 4
      %v331 = vadd.f32 %v329, %v330
      %v332 = vrot.slane %v331, 2
      %v333 = vadd.f32 %v331, %v332
      %v334 = vrot.slane %v333, 1
      %v335 = vadd.f32 %v333, %v334
      %s336 = vtos %v335
      %s337 = scalar_lea.smem [#allocation13], 2
      %338 = sst [smem:[%s337]] %s336
    $region45: #{tpu_custom_call.1} parent=1 // pred_fallthru
      _
    // Predicated region
    $region46: #{tpu_custom_call.1} parent=1 // pred_check
      _
    $region47: #{tpu_custom_call.1} parent=1 // pred_check_branch
      %340 = sbr.rel (0) target = $region49
    $region48: #{tpu_custom_call.1} parent=1 // pred_region
      %s342 = ssub.s32 16, 16
      %343 = vsyncadd [#allocation7], %s342
      %346 = dma.smem_to_hbm [#allocation13], 16, %s5, [#allocation7]
    $region49: #{tpu_custom_call.1} parent=1 // pred_fallthru
      _
    // Predicated region
    $region50: #{tpu_custom_call.1} parent=1 // pred_check
      _
    $region51: #{tpu_custom_call.1} parent=1 // pred_check_branch
      %348 = sbr.rel (0) target = $region53
    $region52: #{tpu_custom_call.1} parent=1 // pred_region
      %349 = dma.done [#allocation7], 16
    $region53: #{tpu_custom_call.1} parent=1 // pred_fallthru
      _
    %350 = sfence
    %351 = vsyncpa [#allocation6], 1
    %352 = vsyncpa [#allocation9], 1
    %353 = vsyncpa [#allocation12], 1
    %354 = vsyncpa [#allocation7], 1

</llo_original>
